<compile_context>
chip_gen: v7x
topology: tpu7x:2x2x1
jax: 0.10.0
libtpu: 0.0.40
codegen_flags: <defaults>
</compile_context>

<pallas_src>
import jax
import jax.numpy as jnp
from jax import lax
from jax.experimental import pallas as pl
from jax.experimental.pallas import tpu as pltpu

# ---- model dims (small, synthetic) -----------------------------------------
B, C, H, W = 2, 4, 16, 16          # NCHW input, like the PyTorch module
HW = H * W                          # 256 (lane-tile aligned)
NUM_FTRS = 64                       # backbone feature dim ("fc.in_features")
HID1, HID2, OUT = 512, 256, 1       # head: num_ftrs -> 512 -> 256 -> 1
STEM_COLS = 8                       # packed stem slab width (C cols + bias, padded)


def basemodel_kernel(x_ref, stem_ref, head_ref, w1_hbm, w2_hbm, out_ref,
                     w1_vm, w2_vm, sems):
    # ---- start the large head-weight DMAs; they overlap with the VPU stem --
    cp1 = pltpu.make_async_copy(w1_hbm, w1_vm, sems.at[0])
    cp2 = pltpu.make_async_copy(w2_hbm, w2_vm, sems.at[1])
    cp1.start()
    cp2.start()

    # ---- synthetic backbone stem: 1x1 conv (C=4) + ReLU + GAP, on the VPU --
    # x is (C, B*HW) with spatial*batch on the lane axis (lane-dense).
    # C=4 is far too small for the MXU contraction dim, so the conv is 4
    # broadcast multiply-adds (outer-product accumulation over channels).
    x = x_ref[...]                           # (C, B*HW)          f32
    sp = stem_ref[...]                       # (NUM_FTRS, 8): [:, :C]=W^T, [:, C]=bias
    feats = sp[:, 0:1] * x[0:1, :]           # (NUM_FTRS, B*HW)
    for c in range(1, C):
        feats = feats + sp[:, c:c + 1] * x[c:c + 1, :]
    feats = jnp.maximum(feats + sp[:, C:C + 1], 0.0)

    # Global average pool per batch via 128-aligned lane slices.  The 1/HW
    # scale is folded into w1 at pack time, so plain sums suffice here.
    pooled = jnp.concatenate(
        [jnp.sum(feats[:, b * HW:(b + 1) * HW], axis=1, keepdims=True)
         for b in range(B)], axis=1)         # (NUM_FTRS, B) -- no transpose

    hp = head_ref[...]                       # (8, HID1) packed small params
    b1 = hp[0:1, :]                          # (1, HID1)
    b2 = hp[1:2, 0:HID2]                     # (1, HID2)
    w3 = hp[1:2, HID2:2 * HID2]              # (1, HID2)
    b3 = hp[2:3, 0:1]                        # (1, 1)

    # ---- head: Linear(64,512)+ReLU(+Dropout=id) -> Linear(512,256)+ReLU
    #            (+Dropout=id) -> Linear(256,1); bf16 weights, f32 MXU accum.
    pooled_bf = pooled.astype(jnp.bfloat16)
    cp1.wait()
    h1 = lax.dot_general(pooled_bf, w1_vm[...],
                         dimension_numbers=(((0,), (0,)), ((), ())),
                         preferred_element_type=jnp.float32)       # (B, HID1)
    h1 = jnp.maximum(h1 + b1, 0.0)
    cp2.wait()
    h2 = jnp.dot(h1.astype(jnp.bfloat16), w2_vm[...],
                 preferred_element_type=jnp.float32)               # (B, HID2)
    h2 = jnp.maximum(h2 + b2, 0.0)

    # final 256 -> 1 projection: VPU multiply + lane reduce (N=1 MXU is waste)
    out_ref[...] = jnp.sum(h2 * w3, axis=-1, keepdims=True) + b3   # (B, OUT)


def basemodel_forward(x_nchw, kparams):
    stem_p, head_p, w1k, w2k = kparams
    # NCHW -> (C, B*HW): tiny (8 KB) XLA transpose outside the kernel so the
    # stem sees a single lane-dense (4, 512) tile.
    x = x_nchw.reshape(B, C, HW).transpose(1, 0, 2).reshape(C, B * HW)
    args = (x, stem_p, head_p, w1k, w2k)

    flops = 2 * B * (HW * C * NUM_FTRS + NUM_FTRS * HID1
                     + HID1 * HID2 + HID2 * OUT)
    bytes_accessed = int(sum(int(a.size) * a.dtype.itemsize for a in args)
                         + B * OUT * 4)

    return pl.pallas_call(
        basemodel_kernel,
        out_shape=jax.ShapeDtypeStruct((B, OUT), jnp.float32),
        in_specs=[pl.BlockSpec(memory_space=pltpu.MemorySpace.VMEM),  # x
                  pl.BlockSpec(memory_space=pltpu.MemorySpace.VMEM),  # stem slab
                  pl.BlockSpec(memory_space=pltpu.MemorySpace.VMEM),  # head slab
                  pl.BlockSpec(memory_space=pl.ANY),                  # w1 (manual DMA)
                  pl.BlockSpec(memory_space=pl.ANY)],                 # w2 (manual DMA)
        out_specs=pl.BlockSpec(memory_space=pltpu.MemorySpace.VMEM),
        scratch_shapes=[pltpu.VMEM((NUM_FTRS, HID1), jnp.bfloat16),
                        pltpu.VMEM((HID1, HID2), jnp.bfloat16),
                        pltpu.SemaphoreType.DMA((2,))],
        cost_estimate=pl.CostEstimate(flops=flops, transcendentals=0,
                                      bytes_accessed=bytes_accessed),
    )(*args)


def init_params(key):
    """Reference (f32, unpacked) parameters."""
    ks = jax.random.split(key, 8)
    s = 0.05
    wst = s * jax.random.normal(ks[0], (NUM_FTRS, C), jnp.float32)   # stem W^T
    bs = s * jax.random.normal(ks[1], (NUM_FTRS, 1), jnp.float32)    # stem bias
    w1 = s * jax.random.normal(ks[2], (NUM_FTRS, HID1), jnp.float32)
    b1 = s * jax.random.normal(ks[3], (1, HID1), jnp.float32)
    w2 = s * jax.random.normal(ks[4], (HID1, HID2), jnp.float32)
    b2 = s * jax.random.normal(ks[5], (1, HID2), jnp.float32)
    w3 = s * jax.random.normal(ks[6], (1, HID2), jnp.float32)        # row vector
    b3 = s * jax.random.normal(ks[7], (1, 1), jnp.float32)
    return wst, bs, w1, b1, w2, b2, w3, b3


def pack_params(ref_params):
    """Pack small params into two slabs; cast big weights to bf16."""
    wst, bs, w1, b1, w2, b2, w3, b3 = ref_params
    stem_p = jnp.zeros((NUM_FTRS, STEM_COLS), jnp.float32)
    stem_p = stem_p.at[:, 0:C].set(wst)
    stem_p = stem_p.at[:, C:C + 1].set(bs)

    head_p = jnp.zeros((8, HID1), jnp.float32)
    head_p = head_p.at[0, :].set(b1[0])
    head_p = head_p.at[1, 0:HID2].set(b2[0])
    head_p = head_p.at[1, HID2:2 * HID2].set(w3[0])
    head_p = head_p.at[2, 0].set(b3[0, 0])

    # Fold the GAP 1/HW scale into w1 (f32 scale, then bf16 cast; 1/256 is a
    # power of two, so this matches mean-then-matmul exactly).
    w1k = (w1 * (1.0 / HW)).astype(jnp.bfloat16)
    w2k = w2.astype(jnp.bfloat16)
    return stem_p, head_p, w1k, w2k


def reference_forward(x_nchw, ref_params):
    wst, bs, w1, b1, w2, b2, w3, b3 = ref_params
    hp = lax.Precision.HIGHEST
    x = x_nchw.reshape(B, C, HW)
    feats = jnp.einsum('fc,bcp->bfp', wst, x, precision=hp) + bs[None, :, :]
    pooled = jnp.mean(jnp.maximum(feats, 0.0), axis=2)               # (B, F)
    h1 = jnp.maximum(
        jnp.dot(pooled.astype(jnp.bfloat16).astype(jnp.float32),
                w1.astype(jnp.bfloat16).astype(jnp.float32), precision=hp)
        + b1, 0.0)
    h2 = jnp.maximum(
        jnp.dot(h1.astype(jnp.bfloat16).astype(jnp.float32),
                w2.astype(jnp.bfloat16).astype(jnp.float32), precision=hp)
        + b2, 0.0)
    return jnp.sum(h2 * w3, axis=-1, keepdims=True) + b3             # (B, 1)


if __name__ == "__main__":
    key = jax.random.PRNGKey(0)
    k_x, k_p = jax.random.split(key)
    x = jax.random.normal(k_x, (B, C, H, W), jnp.float32)    # NCHW like PyTorch
    ref_params = init_params(k_p)
    kparams = pack_params(ref_params)

    out = jax.block_until_ready(basemodel_forward(x, kparams))
    ref = reference_forward(x, ref_params)

    assert out.shape == (B, OUT)
    assert jnp.allclose(out, ref, atol=1e-3, rtol=1e-3), (out, ref)
    print("KERNEL_OK")
</pallas_src>

<mosaic_0001>
module attributes {stable_mosaic.version = 11 : i64} {
  func.func @basemodel_kernel(%arg0: memref<4x512xf32, #tpu.memory_space<vmem>>, %arg1: memref<64x8xf32, #tpu.memory_space<vmem>>, %arg2: memref<8x512xf32, #tpu.memory_space<vmem>>, %arg3: memref<64x512xbf16, #tpu.memory_space<any>>, %arg4: memref<512x256xbf16, #tpu.memory_space<any>>, %arg5: memref<2x1xf32, #tpu.memory_space<vmem>>, %arg6: memref<64x512xbf16, #tpu.memory_space<vmem>>, %arg7: memref<512x256xbf16, #tpu.memory_space<vmem>>, %arg8: memref<2x!tpu.dma_semaphore, #tpu.memory_space<semaphore_mem>>) attributes {dimension_semantics = [], scalar_prefetch = 0 : i64, scratch_operands = 3 : i64, tpu.core_type = #tpu.core_type<tc>} {
    %c0_i32 = arith.constant 0 : i32
    %0 = tpu.memref_slice %arg8[%c0_i32] : memref<2x!tpu.dma_semaphore, #tpu.memory_space<semaphore_mem>> -> memref<1x!tpu.dma_semaphore, #tpu.memory_space<semaphore_mem>>
    %1 = tpu.memref_squeeze %0 : memref<1x!tpu.dma_semaphore, #tpu.memory_space<semaphore_mem>> -> memref<!tpu.dma_semaphore, #tpu.memory_space<semaphore_mem>>
    tpu.enqueue_dma source(%arg3 : memref<64x512xbf16, #tpu.memory_space<any>>) target(%arg6 : memref<64x512xbf16, #tpu.memory_space<vmem>>) target_semaphore(%1 : memref<!tpu.dma_semaphore, #tpu.memory_space<semaphore_mem>>)
    %c1_i32 = arith.constant 1 : i32
    %2 = tpu.memref_slice %arg8[%c1_i32] : memref<2x!tpu.dma_semaphore, #tpu.memory_space<semaphore_mem>> -> memref<1x!tpu.dma_semaphore, #tpu.memory_space<semaphore_mem>>
    %3 = tpu.memref_squeeze %2 : memref<1x!tpu.dma_semaphore, #tpu.memory_space<semaphore_mem>> -> memref<!tpu.dma_semaphore, #tpu.memory_space<semaphore_mem>>
    tpu.enqueue_dma source(%arg4 : memref<512x256xbf16, #tpu.memory_space<any>>) target(%arg7 : memref<512x256xbf16, #tpu.memory_space<vmem>>) target_semaphore(%3 : memref<!tpu.dma_semaphore, #tpu.memory_space<semaphore_mem>>)
    %c0 = arith.constant 0 : index
    %c0_0 = arith.constant 0 : index
    %4 = vector.load %arg0[%c0, %c0_0] : memref<4x512xf32, #tpu.memory_space<vmem>>, vector<4x512xf32>
    %c0_1 = arith.constant 0 : index
    %c0_2 = arith.constant 0 : index
    %5 = vector.load %arg1[%c0_1, %c0_2] : memref<64x8xf32, #tpu.memory_space<vmem>>, vector<64x8xf32>
    %6 = vector.extract_strided_slice %5 {offsets = [0, 0], sizes = [64, 1], strides = [1, 1]} : vector<64x8xf32> to vector<64x1xf32>
    %7 = vector.extract_strided_slice %4 {offsets = [0, 0], sizes = [1, 512], strides = [1, 1]} : vector<4x512xf32> to vector<1x512xf32>
    %8 = vector.broadcast %6 : vector<64x1xf32> to vector<64x512xf32>
    %9 = vector.broadcast %7 : vector<1x512xf32> to vector<64x512xf32>
    %10 = arith.mulf %8, %9 : vector<64x512xf32>
    %11 = vector.extract_strided_slice %5 {offsets = [0, 1], sizes = [64, 1], strides = [1, 1]} : vector<64x8xf32> to vector<64x1xf32>
    %12 = vector.extract_strided_slice %4 {offsets = [1, 0], sizes = [1, 512], strides = [1, 1]} : vector<4x512xf32> to vector<1x512xf32>
    %13 = vector.broadcast %11 : vector<64x1xf32> to vector<64x512xf32>
    %14 = vector.broadcast %12 : vector<1x512xf32> to vector<64x512xf32>
    %15 = arith.mulf %13, %14 : vector<64x512xf32>
    %16 = arith.addf %10, %15 : vector<64x512xf32>
    %17 = vector.extract_strided_slice %5 {offsets = [0, 2], sizes = [64, 1], strides = [1, 1]} : vector<64x8xf32> to vector<64x1xf32>
    %18 = vector.extract_strided_slice %4 {offsets = [2, 0], sizes = [1, 512], strides = [1, 1]} : vector<4x512xf32> to vector<1x512xf32>
    %19 = vector.broadcast %17 : vector<64x1xf32> to vector<64x512xf32>
    %20 = vector.broadcast %18 : vector<1x512xf32> to vector<64x512xf32>
    %21 = arith.mulf %19, %20 : vector<64x512xf32>
    %22 = arith.addf %16, %21 : vector<64x512xf32>
    %23 = vector.extract_strided_slice %5 {offsets = [0, 3], sizes = [64, 1], strides = [1, 1]} : vector<64x8xf32> to vector<64x1xf32>
    %24 = vector.extract_strided_slice %4 {offsets = [3, 0], sizes = [1, 512], strides = [1, 1]} : vector<4x512xf32> to vector<1x512xf32>
    %25 = vector.broadcast %23 : vector<64x1xf32> to vector<64x512xf32>
    %26 = vector.broadcast %24 : vector<1x512xf32> to vector<64x512xf32>
    %27 = arith.mulf %25, %26 : vector<64x512xf32>
    %28 = arith.addf %22, %27 : vector<64x512xf32>
    %29 = vector.extract_strided_slice %5 {offsets = [0, 4], sizes = [64, 1], strides = [1, 1]} : vector<64x8xf32> to vector<64x1xf32>
    %30 = vector.broadcast %29 : vector<64x1xf32> to vector<64x512xf32>
    %31 = arith.addf %28, %30 : vector<64x512xf32>
    %cst = arith.constant 0.000000e+00 : f32
    %32 = vector.broadcast %cst : f32 to vector<64x512xf32>
    %33 = arith.maximumf %31, %32 : vector<64x512xf32>
    %34 = vector.extract_strided_slice %33 {offsets = [0, 0], sizes = [64, 256], strides = [1, 1]} : vector<64x512xf32> to vector<64x256xf32>
    %cst_3 = arith.constant dense<0.000000e+00> : vector<64xf32>
    %35 = vector.multi_reduction <add>, %34, %cst_3 [1] : vector<64x256xf32> to vector<64xf32>
    %36 = vector.shape_cast %35 : vector<64xf32> to vector<64x1xf32>
    %37 = vector.extract_strided_slice %33 {offsets = [0, 256], sizes = [64, 256], strides = [1, 1]} : vector<64x512xf32> to vector<64x256xf32>
    %cst_4 = arith.constant dense<0.000000e+00> : vector<64xf32>
    %38 = vector.multi_reduction <add>, %37, %cst_4 [1] : vector<64x256xf32> to vector<64xf32>
    %39 = vector.shape_cast %38 : vector<64xf32> to vector<64x1xf32>
    %40 = tpu.concatenate %36, %39 in 1 : vector<64x1xf32>, vector<64x1xf32> -> vector<64x2xf32>
    %c0_5 = arith.constant 0 : index
    %c0_6 = arith.constant 0 : index
    %41 = vector.load %arg2[%c0_5, %c0_6] : memref<8x512xf32, #tpu.memory_space<vmem>>, vector<8x512xf32>
    %42 = vector.extract_strided_slice %41 {offsets = [0, 0], sizes = [1, 512], strides = [1, 1]} : vector<8x512xf32> to vector<1x512xf32>
    %43 = vector.extract_strided_slice %41 {offsets = [1, 0], sizes = [1, 256], strides = [1, 1]} : vector<8x512xf32> to vector<1x256xf32>
    %44 = vector.extract_strided_slice %41 {offsets = [1, 256], sizes = [1, 256], strides = [1, 1]} : vector<8x512xf32> to vector<1x256xf32>
    %45 = vector.extract_strided_slice %41 {offsets = [2, 0], sizes = [1, 1], strides = [1, 1]} : vector<8x512xf32> to vector<1x1xf32>
    %46 = arith.truncf %40 : vector<64x2xf32> to vector<64x2xbf16>
    %c0_i32_7 = arith.constant 0 : i32
    %47 = tpu.memref_slice %arg8[%c0_i32_7] : memref<2x!tpu.dma_semaphore, #tpu.memory_space<semaphore_mem>> -> memref<1x!tpu.dma_semaphore, #tpu.memory_space<semaphore_mem>>
    %48 = tpu.memref_squeeze %47 : memref<1x!tpu.dma_semaphore, #tpu.memory_space<semaphore_mem>> -> memref<!tpu.dma_semaphore, #tpu.memory_space<semaphore_mem>>
    tpu.wait_dma2 semaphore(%48 : memref<!tpu.dma_semaphore, #tpu.memory_space<semaphore_mem>>) src(%arg3 : memref<64x512xbf16, #tpu.memory_space<any>>) dst(%arg6 : memref<64x512xbf16, #tpu.memory_space<vmem>>)
    %c0_8 = arith.constant 0 : index
    %c0_9 = arith.constant 0 : index
    %49 = vector.load %arg6[%c0_8, %c0_9] : memref<64x512xbf16, #tpu.memory_space<vmem>>, vector<64x512xbf16>
    %cst_10 = arith.constant dense<0.000000e+00> : vector<2x512xf32>
    %50 = tpu.matmul %46, %49, %cst_10 {dimension_numbers = #tpu.dot_dimension_numbers<[0], [0], [1], [1], [0, 1, 1, 1], [], []>} : vector<64x2xbf16>, vector<64x512xbf16>, vector<2x512xf32> -> vector<2x512xf32>
    %51 = vector.broadcast %42 : vector<1x512xf32> to vector<2x512xf32>
    %52 = arith.addf %50, %51 : vector<2x512xf32>
    %cst_11 = arith.constant 0.000000e+00 : f32
    %53 = vector.broadcast %cst_11 : f32 to vector<2x512xf32>
    %54 = arith.maximumf %52, %53 : vector<2x512xf32>
    %c1_i32_12 = arith.constant 1 : i32
    %55 = tpu.memref_slice %arg8[%c1_i32_12] : memref<2x!tpu.dma_semaphore, #tpu.memory_space<semaphore_mem>> -> memref<1x!tpu.dma_semaphore, #tpu.memory_space<semaphore_mem>>
    %56 = tpu.memref_squeeze %55 : memref<1x!tpu.dma_semaphore, #tpu.memory_space<semaphore_mem>> -> memref<!tpu.dma_semaphore, #tpu.memory_space<semaphore_mem>>
    tpu.wait_dma2 semaphore(%56 : memref<!tpu.dma_semaphore, #tpu.memory_space<semaphore_mem>>) src(%arg4 : memref<512x256xbf16, #tpu.memory_space<any>>) dst(%arg7 : memref<512x256xbf16, #tpu.memory_space<vmem>>)
    %57 = arith.truncf %54 : vector<2x512xf32> to vector<2x512xbf16>
    %c0_13 = arith.constant 0 : index
    %c0_14 = arith.constant 0 : index
    %58 = vector.load %arg7[%c0_13, %c0_14] : memref<512x256xbf16, #tpu.memory_space<vmem>>, vector<512x256xbf16>
    %cst_15 = arith.constant dense<0.000000e+00> : vector<2x256xf32>
    %59 = tpu.matmul %57, %58, %cst_15 {dimension_numbers = #tpu.dot_dimension_numbers<[1], [0], [0], [1], [0, 0, 1, 1], [], []>} : vector<2x512xbf16>, vector<512x256xbf16>, vector<2x256xf32> -> vector<2x256xf32>
    %60 = vector.broadcast %43 : vector<1x256xf32> to vector<2x256xf32>
    %61 = arith.addf %59, %60 : vector<2x256xf32>
    %cst_16 = arith.constant 0.000000e+00 : f32
    %62 = vector.broadcast %cst_16 : f32 to vector<2x256xf32>
    %63 = arith.maximumf %61, %62 : vector<2x256xf32>
    %64 = vector.broadcast %44 : vector<1x256xf32> to vector<2x256xf32>
    %65 = arith.mulf %63, %64 : vector<2x256xf32>
    %cst_17 = arith.constant dense<0.000000e+00> : vector<2xf32>
    %66 = vector.multi_reduction <add>, %65, %cst_17 [1] : vector<2x256xf32> to vector<2xf32>
    %67 = vector.shape_cast %66 : vector<2xf32> to vector<2x1xf32>
    %68 = vector.broadcast %45 : vector<1x1xf32> to vector<2x1xf32>
    %69 = arith.addf %67, %68 : vector<2x1xf32>
    %c0_18 = arith.constant 0 : index
    %c0_19 = arith.constant 0 : index
    %70 = vector.load %arg5[%c0_18, %c0_19] : memref<2x1xf32, #tpu.memory_space<vmem>>, vector<2x1xf32>
    tpu.vector_store %arg5[%c0_18, %c0_19], %69 {strides = array<i32>} : memref<2x1xf32, #tpu.memory_space<vmem>>, vector<2x1xf32>,
    return
  }
}

</mosaic_0001>

<llo_original>
// kernel: tpu_custom_call.1
$region0: #{tpu_custom_call.1}
  #allocation0 [shape = 'u32[]', space=smem, size = 0x4, offset = 0x4, fixed_abs, tag = 'smem constant byte address 0x4 - core index']
  #allocation1 [shape = 'u32[144,128]{1,0:T(1,128)}', space=vmem, size = 0x12000, scoped, tag = 'internal scratch']
  #allocation2 [shape = 'bf16[64,512]{1,0:T(16,128)(2,1)}', space=vmem, size = 0x10000, scoped, tag = 'scratch operand']
  #allocation3 [shape = 'bf16[512,256]{1,0:T(16,128)(2,1)}', space=vmem, size = 0x40000, scoped, tag = 'scratch operand']
  #allocation4 [shape = 's32[2]{0}', space=sflag, size = 0x8, scoped, tag = 'scratch operand']
  #allocation5 [shape = 's32[]', space=sflag, size = 0x4, offset = 0, fixed_abs, tag = 'sflag constant byte address 0x0 - dummy sync flag']
  #allocation7 [shape = 's32[]', space=sflag, size = 0x4, offset = 0, fixed_abs, tag = 'sflag constant byte address 0x0 - dummy sync flag']
  %s0 = inlined_call_operand.vmem [shape: f32[4,512], index: 0, kind: input, shape index: {}]
  %s1 = inlined_call_operand.vmem [shape: f32[64,8], index: 1, kind: input, shape index: {}]
  %s2 = inlined_call_operand.vmem [shape: f32[8,512], index: 2, kind: input, shape index: {}]
  %s3 = inlined_call_operand.hbm [shape: bf16[64,512], index: 3, kind: input, shape index: {}]
  %s4 = inlined_call_operand.hbm [shape: bf16[512,256], index: 4, kind: input, shape index: {}]
  %s5 = inlined_call_operand.vmem [shape: f32[2,1], index: 5, kind: output, shape index: {}]
  %s6 = sld [smem:[#allocation0]]
  $region22: #{tpu_custom_call.1} parent=0
    _
  %s8 = ssub.s32 1, %s6
  %s9 = scalar_select 0, %s8, %s6
  $region1: #{tpu_custom_call.1} parent=0
    #allocation6 [shape = 'u32[9]{0}', space=smem, size = 0x24, scoped, tag = 'DMA stride descriptor']
    #allocation8 [shape = 'u32[9]{0}', space=smem, size = 0x24, scoped, tag = 'DMA stride descriptor']
    // Predicated region
    $region2: #{tpu_custom_call.1} parent=1 // pred_check
      _
    $region3: #{tpu_custom_call.1} parent=1 // pred_check_branch
      %11 = sbr.rel (0) target = $region5
    $region4: #{tpu_custom_call.1} parent=1 // pred_region
      _
    $region5: #{tpu_custom_call.1} parent=1 // pred_fallthru
      _
    // Predicated region
    $region6: #{tpu_custom_call.1} parent=1 // pred_check
      _
    $region7: #{tpu_custom_call.1} parent=1 // pred_check_branch
      %13 = sbr.rel (0) target = $region9
    $region8: #{tpu_custom_call.1} parent=1 // pred_region
      _
    $region9: #{tpu_custom_call.1} parent=1 // pred_fallthru
      _
    // Predicated region
    $region10: #{tpu_custom_call.1} parent=1 // pred_check
      _
    $region11: #{tpu_custom_call.1} parent=1 // pred_check_branch
      %15 = sbr.rel (0) target = $region13
    $region12: #{tpu_custom_call.1} parent=1 // pred_region
      _
    $region13: #{tpu_custom_call.1} parent=1 // pred_fallthru
      _
    %s18 = sshll.u32 1, 14
    %s19 = sxor.u32 4294967295, %s18
    %s21 = sld [smem:[#allocation0]]
    %s22 = sadd.s32 2, %s21
    %s24 = sshll.u32 7, 26
    %s25 = sxor.u32 4294967295, %s24
    %s26 = sand.u32 0, %s25
    %s27 = sshll.u32 %s22, 26
    %s28 = sor.u32 %s26, %s27
    %s29 = sshll.u32 [#allocation2], 4
    %s30 = int_to_ptr.vmem [resolvable:$true] %s29
    %33 = sst [smem:[#allocation6]] 512
    %s34 = scalar_lea.smem [#allocation6], 1
    %35 = sst [smem:[%s34]] 512
    %s36 = scalar_lea.smem [#allocation6], 2
    %37 = sst [smem:[%s36]] 4
    %s38 = scalar_lea.smem [#allocation6], 3
    %39 = sst [smem:[%s38]] 64
    %s40 = scalar_lea.smem [#allocation6], 4
    %41 = sst [smem:[%s40]] 128
    %s42 = scalar_lea.smem [#allocation6], 5
    %43 = sst [smem:[%s42]] 2
    %s44 = scalar_lea.smem [#allocation6], 6
    %45 = sst [smem:[%s44]] 256
    %s46 = scalar_lea.smem [#allocation6], 7
    %47 = sst [smem:[%s46]] 64
    %s48 = scalar_lea.smem [#allocation6], 8
    %49 = sst [smem:[%s48]] 4
    %51 = dma.general %s3, 2048, %s30, [#allocation4], [#allocation5], [#allocation6], %s28, 0
    %s52 = scalar_lea.sflag [#allocation4], 1
    %s54 = sshll.u32 1, 14
    %s55 = sxor.u32 4294967295, %s54
    %s57 = sadd.s32 2, %s21
    %s59 = sshll.u32 7, 26
    %s60 = sxor.u32 4294967295, %s59
    %s61 = sand.u32 0, %s60
    %s62 = sshll.u32 %s57, 26
    %s63 = sor.u32 %s61, %s62
    %s64 = sshll.u32 [#allocation3], 4
    %s65 = int_to_ptr.vmem [resolvable:$true] %s64
    %68 = sst [smem:[#allocation8]] 256
    %s69 = scalar_lea.smem [#allocation8], 1
    %70 = sst [smem:[%s69]] 256
    %s71 = scalar_lea.smem [#allocation8], 2
    %72 = sst [smem:[%s71]] 2
    %s73 = scalar_lea.smem [#allocation8], 3
    %74 = sst [smem:[%s73]] 64
    %s75 = scalar_lea.smem [#allocation8], 4
    %76 = sst [smem:[%s75]] 128
    %s77 = scalar_lea.smem [#allocation8], 5
    %78 = sst [smem:[%s77]] 2
    %s79 = scalar_lea.smem [#allocation8], 6
    %80 = sst [smem:[%s79]] 128
    %s81 = scalar_lea.smem [#allocation8], 7
    %82 = sst [smem:[%s81]] 64
    %s83 = scalar_lea.smem [#allocation8], 8
    %84 = sst [smem:[%s83]] 4
    %86 = dma.general %s4, 8192, %s65, %s52, [#allocation7], [#allocation8], %s63, 0
    %v87 = vld [vmem:[%s0] sm:$0xff]
    %v88 = vld [vmem:[%s0 + $0x8] sm:$0xff]
    %v89 = vld [vmem:[%s1] sm:$0xff]
    %v90 = vld [vmem:[%s1 + $0x8] sm:$0xff]
    %v91 = vld [vmem:[%s1 + $0x10] sm:$0xff]
    %v92 = vld [vmem:[%s1 + $0x18] sm:$0xff]
    %v93 = vld [vmem:[%s1 + $0x20] sm:$0xff]
    %v94 = vld [vmem:[%s1 + $0x28] sm:$0xff]
    %v95 = vld [vmem:[%s1 + $0x30] sm:$0xff]
    %v96 = vld [vmem:[%s1 + $0x38] sm:$0xff]
    %98 = vset.pattern.permute.xlu0 0
    %99 = vperm.xlu0 %98, %v89
    %v100 = vpop.permute.xlu0 %99
    %103 = vset.pattern.permute.xlu0 0
    %104 = vperm.xlu0 %103, %v90
    %v105 = vpop.permute.xlu0 %104
    %108 = vset.pattern.permute.xlu0 0
    %109 = vperm.xlu0 %108, %v91
    %v110 = vpop.permute.xlu0 %109
    %113 = vset.pattern.permute.xlu0 0
    %114 = vperm.xlu0 %113, %v92
    %v115 = vpop.permute.xlu0 %114
    %118 = vset.pattern.permute.xlu0 0
    %119 = vperm.xlu0 %118, %v93
    %v120 = vpop.permute.xlu0 %119
    %123 = vset.pattern.permute.xlu0 0
    %124 = vperm.xlu0 %123, %v94
    %v125 = vpop.permute.xlu0 %124
    %128 = vset.pattern.permute.xlu0 0
    %129 = vperm.xlu0 %128, %v95
    %v130 = vpop.permute.xlu0 %129
    %133 = vset.pattern.permute.xlu0 0
    %134 = vperm.xlu0 %133, %v96
    %v135 = vpop.permute.xlu0 %134
    %v139 = vlaneseq
    %v140 = vshrl.u32 %v139, 7
    %v141 = vsub.s32 0, %v140
    %v142 = vrot.slane %v87, %v141
    %v143 = vlaneseq
    %v144 = vshrl.u32 %v143, 7
    %v145 = vsub.s32 4, %v144
    %v146 = vrot.slane %v87, %v145
    %v147 = vlaneseq
    %v148 = vshrl.u32 %v147, 7
    %v149 = vsub.s32 0, %v148
    %v150 = vrot.slane %v88, %v149
    %v151 = vlaneseq
    %v152 = vshrl.u32 %v151, 7
    %v153 = vsub.s32 4, %v152
    %v154 = vrot.slane %v88, %v153
    %v159 = vlaneseq
    %v160 = vshrl.u32 %v159, 7
    %v161 = vsub.s32 0, %v160
    %v162 = vrot.slane %v142, %v161
    %v163 = vlaneseq
    %v164 = vshrl.u32 %v163, 7
    %v165 = vsub.s32 0, %v164
    %v166 = vrot.slane %v146, %v165
    %v167 = vlaneseq
    %v168 = vshrl.u32 %v167, 7
    %v169 = vsub.s32 0, %v168
    %v170 = vrot.slane %v150, %v169
    %v171 = vlaneseq
    %v172 = vshrl.u32 %v171, 7
    %v173 = vsub.s32 0, %v172
    %v174 = vrot.slane %v154, %v173
    %v175 = vmul.f32 %v100, %v162
    %v176 = vmul.f32 %v100, %v166
    %v177 = vmul.f32 %v100, %v170
    %v178 = vmul.f32 %v100, %v174
    %v179 = vmul.f32 %v105, %v162
    %v180 = vmul.f32 %v105, %v166
    %v181 = vmul.f32 %v105, %v170
    %v182 = vmul.f32 %v105, %v174
    %v183 = vmul.f32 %v110, %v162
    %v184 = vmul.f32 %v110, %v166
    %v185 = vmul.f32 %v110, %v170
    %v186 = vmul.f32 %v110, %v174
    %v187 = vmul.f32 %v115, %v162
    %v188 = vmul.f32 %v115, %v166
    %v189 = vmul.f32 %v115, %v170
    %v190 = vmul.f32 %v115, %v174
    %v191 = vmul.f32 %v120, %v162
    %v192 = vmul.f32 %v120, %v166
    %v193 = vmul.f32 %v120, %v170
    %v194 = vmul.f32 %v120, %v174
    %v195 = vmul.f32 %v125, %v162
    %v196 = vmul.f32 %v125, %v166
    %v197 = vmul.f32 %v125, %v170
    %v198 = vmul.f32 %v125, %v174
    %v199 = vmul.f32 %v130, %v162
    %v200 = vmul.f32 %v130, %v166
    %v201 = vmul.f32 %v130, %v170
    %v202 = vmul.f32 %v130, %v174
    %v203 = vmul.f32 %v135, %v162
    %v204 = vmul.f32 %v135, %v166
    %v205 = vmul.f32 %v135, %v170
    %v206 = vmul.f32 %v135, %v174
    %207 = vset.pattern.permute.xlu0 1
    %208 = vperm.xlu0 %207, %v89
    %v209 = vpop.permute.xlu0 %208
    %211 = vset.pattern.permute.xlu0 1
    %212 = vperm.xlu0 %211, %v90
    %v213 = vpop.permute.xlu0 %212
    %215 = vset.pattern.permute.xlu0 1
    %216 = vperm.xlu0 %215, %v91
    %v217 = vpop.permute.xlu0 %216
    %219 = vset.pattern.permute.xlu0 1
    %220 = vperm.xlu0 %219, %v92
    %v221 = vpop.permute.xlu0 %220
    %223 = vset.pattern.permute.xlu0 1
    %224 = vperm.xlu0 %223, %v93
    %v225 = vpop.permute.xlu0 %224
    %227 = vset.pattern.permute.xlu0 1
    %228 = vperm.xlu0 %227, %v94
    %v229 = vpop.permute.xlu0 %228
    %231 = vset.pattern.permute.xlu0 1
    %232 = vperm.xlu0 %231, %v95
    %v233 = vpop.permute.xlu0 %232
    %235 = vset.pattern.permute.xlu0 1
    %236 = vperm.xlu0 %235, %v96
    %v237 = vpop.permute.xlu0 %236
    %v239 = vlaneseq
    %v240 = vshrl.u32 %v239, 7
    %v241 = vsub.s32 1, %v240
    %v242 = vrot.slane %v87, %v241
    %v243 = vlaneseq
    %v244 = vshrl.u32 %v243, 7
    %v245 = vsub.s32 5, %v244
    %v246 = vrot.slane %v87, %v245
    %v247 = vlaneseq
    %v248 = vshrl.u32 %v247, 7
    %v249 = vsub.s32 1, %v248
    %v250 = vrot.slane %v88, %v249
    %v251 = vlaneseq
    %v252 = vshrl.u32 %v251, 7
    %v253 = vsub.s32 5, %v252
    %v254 = vrot.slane %v88, %v253
    %v259 = vlaneseq
    %v260 = vshrl.u32 %v259, 7
    %v261 = vsub.s32 1, %v260
    %v262 = vrot.slane %v242, %v261
    %v263 = vlaneseq
    %v264 = vshrl.u32 %v263, 7
    %v265 = vsub.s32 1, %v264
    %v266 = vrot.slane %v246, %v265
    %v267 = vlaneseq
    %v268 = vshrl.u32 %v267, 7
    %v269 = vsub.s32 1, %v268
    %v270 = vrot.slane %v250, %v269
    %v271 = vlaneseq
    %v272 = vshrl.u32 %v271, 7
    %v273 = vsub.s32 1, %v272
    %v274 = vrot.slane %v254, %v273
    %v275 = vmul.f32 %v209, %v262
    %v276 = vmul.f32 %v209, %v266
    %v277 = vmul.f32 %v209, %v270
    %v278 = vmul.f32 %v209, %v274
    %v279 = vmul.f32 %v213, %v262
    %v280 = vmul.f32 %v213, %v266
    %v281 = vmul.f32 %v213, %v270
    %v282 = vmul.f32 %v213, %v274
    %v283 = vmul.f32 %v217, %v262
    %v284 = vmul.f32 %v217, %v266
    %v285 = vmul.f32 %v217, %v270
    %v286 = vmul.f32 %v217, %v274
    %v287 = vmul.f32 %v221, %v262
    %v288 = vmul.f32 %v221, %v266
    %v289 = vmul.f32 %v221, %v270
    %v290 = vmul.f32 %v221, %v274
    %v291 = vmul.f32 %v225, %v262
    %v292 = vmul.f32 %v225, %v266
    %v293 = vmul.f32 %v225, %v270
    %v294 = vmul.f32 %v225, %v274
    %v295 = vmul.f32 %v229, %v262
    %v296 = vmul.f32 %v229, %v266
    %v297 = vmul.f32 %v229, %v270
    %v298 = vmul.f32 %v229, %v274
    %v299 = vmul.f32 %v233, %v262
    %v300 = vmul.f32 %v233, %v266
    %v301 = vmul.f32 %v233, %v270
    %v302 = vmul.f32 %v233, %v274
    %v303 = vmul.f32 %v237, %v262
    %v304 = vmul.f32 %v237, %v266
    %v305 = vmul.f32 %v237, %v270
    %v306 = vmul.f32 %v237, %v274
    %v307 = vadd.f32 %v175, %v275
    %v308 = vadd.f32 %v176, %v276
    %v309 = vadd.f32 %v177, %v277
    %v310 = vadd.f32 %v178, %v278
    %v311 = vadd.f32 %v179, %v279
    %v312 = vadd.f32 %v180, %v280
    %v313 = vadd.f32 %v181, %v281
    %v314 = vadd.f32 %v182, %v282
    %v315 = vadd.f32 %v183, %v283
    %v316 = vadd.f32 %v184, %v284
    %v317 = vadd.f32 %v185, %v285
    %v318 = vadd.f32 %v186, %v286
    %v319 = vadd.f32 %v187, %v287
    %v320 = vadd.f32 %v188, %v288
    %v321 = vadd.f32 %v189, %v289
    %v322 = vadd.f32 %v190, %v290
    %v323 = vadd.f32 %v191, %v291
    %v324 = vadd.f32 %v192, %v292
    %v325 = vadd.f32 %v193, %v293
    %v326 = vadd.f32 %v194, %v294
    %v327 = vadd.f32 %v195, %v295
    %v328 = vadd.f32 %v196, %v296
    %v329 = vadd.f32 %v197, %v297
    %v330 = vadd.f32 %v198, %v298
    %v331 = vadd.f32 %v199, %v299
    %v332 = vadd.f32 %v200, %v300
    %v333 = vadd.f32 %v201, %v301
    %v334 = vadd.f32 %v202, %v302
    %v335 = vadd.f32 %v203, %v303
    %v336 = vadd.f32 %v204, %v304
    %v337 = vadd.f32 %v205, %v305
    %v338 = vadd.f32 %v206, %v306
    %339 = vset.pattern.permute.xlu0 2
    %340 = vperm.xlu0 %339, %v89
    %v341 = vpop.permute.xlu0 %340
    %343 = vset.pattern.permute.xlu0 2
    %344 = vperm.xlu0 %343, %v90
    %v345 = vpop.permute.xlu0 %344
    %347 = vset.pattern.permute.xlu0 2
    %348 = vperm.xlu0 %347, %v91
    %v349 = vpop.permute.xlu0 %348
    %351 = vset.pattern.permute.xlu0 2
    %352 = vperm.xlu0 %351, %v92
    %v353 = vpop.permute.xlu0 %352
    %355 = vset.pattern.permute.xlu0 2
    %356 = vperm.xlu0 %355, %v93
    %v357 = vpop.permute.xlu0 %356
    %359 = vset.pattern.permute.xlu0 2
    %360 = vperm.xlu0 %359, %v94
    %v361 = vpop.permute.xlu0 %360
    %363 = vset.pattern.permute.xlu0 2
    %364 = vperm.xlu0 %363, %v95
    %v365 = vpop.permute.xlu0 %364
    %367 = vset.pattern.permute.xlu0 2
    %368 = vperm.xlu0 %367, %v96
    %v369 = vpop.permute.xlu0 %368
    %v371 = vlaneseq
    %v372 = vshrl.u32 %v371, 7
    %v373 = vsub.s32 2, %v372
    %v374 = vrot.slane %v87, %v373
    %v375 = vlaneseq
    %v376 = vshrl.u32 %v375, 7
    %v377 = vsub.s32 6, %v376
    %v378 = vrot.slane %v87, %v377
    %v379 = vlaneseq
    %v380 = vshrl.u32 %v379, 7
    %v381 = vsub.s32 2, %v380
    %v382 = vrot.slane %v88, %v381
    %v383 = vlaneseq
    %v384 = vshrl.u32 %v383, 7
    %v385 = vsub.s32 6, %v384
    %v386 = vrot.slane %v88, %v385
    %v391 = vlaneseq
    %v392 = vshrl.u32 %v391, 7
    %v393 = vsub.s32 2, %v392
    %v394 = vrot.slane %v374, %v393
    %v395 = vlaneseq
    %v396 = vshrl.u32 %v395, 7
    %v397 = vsub.s32 2, %v396
    %v398 = vrot.slane %v378, %v397
    %v399 = vlaneseq
    %v400 = vshrl.u32 %v399, 7
    %v401 = vsub.s32 2, %v400
    %v402 = vrot.slane %v382, %v401
    %v403 = vlaneseq
    %v404 = vshrl.u32 %v403, 7
    %v405 = vsub.s32 2, %v404
    %v406 = vrot.slane %v386, %v405
    %v407 = vmul.f32 %v341, %v394
    %v408 = vmul.f32 %v341, %v398
    %v409 = vmul.f32 %v341, %v402
    %v410 = vmul.f32 %v341, %v406
    %v411 = vmul.f32 %v345, %v394
    %v412 = vmul.f32 %v345, %v398
    %v413 = vmul.f32 %v345, %v402
    %v414 = vmul.f32 %v345, %v406
    %v415 = vmul.f32 %v349, %v394
    %v416 = vmul.f32 %v349, %v398
    %v417 = vmul.f32 %v349, %v402
    %v418 = vmul.f32 %v349, %v406
    %v419 = vmul.f32 %v353, %v394
    %v420 = vmul.f32 %v353, %v398
    %v421 = vmul.f32 %v353, %v402
    %v422 = vmul.f32 %v353, %v406
    %v423 = vmul.f32 %v357, %v394
    %v424 = vmul.f32 %v357, %v398
    %v425 = vmul.f32 %v357, %v402
    %v426 = vmul.f32 %v357, %v406
    %v427 = vmul.f32 %v361, %v394
    %v428 = vmul.f32 %v361, %v398
    %v429 = vmul.f32 %v361, %v402
    %v430 = vmul.f32 %v361, %v406
    %v431 = vmul.f32 %v365, %v394
    %v432 = vmul.f32 %v365, %v398
    %v433 = vmul.f32 %v365, %v402
    %v434 = vmul.f32 %v365, %v406
    %v435 = vmul.f32 %v369, %v394
    %v436 = vmul.f32 %v369, %v398
    %v437 = vmul.f32 %v369, %v402
    %v438 = vmul.f32 %v369, %v406
    %v439 = vadd.f32 %v307, %v407
    %v440 = vadd.f32 %v308, %v408
    %v441 = vadd.f32 %v309, %v409
    %v442 = vadd.f32 %v310, %v410
    %v443 = vadd.f32 %v311, %v411
    %v444 = vadd.f32 %v312, %v412
    %v445 = vadd.f32 %v313, %v413
    %v446 = vadd.f32 %v314, %v414
    %v447 = vadd.f32 %v315, %v415
    %v448 = vadd.f32 %v316, %v416
    %v449 = vadd.f32 %v317, %v417
    %v450 = vadd.f32 %v318, %v418
    %v451 = vadd.f32 %v319, %v419
    %v452 = vadd.f32 %v320, %v420
    %v453 = vadd.f32 %v321, %v421
    %v454 = vadd.f32 %v322, %v422
    %v455 = vadd.f32 %v323, %v423
    %v456 = vadd.f32 %v324, %v424
    %v457 = vadd.f32 %v325, %v425
    %v458 = vadd.f32 %v326, %v426
    %v459 = vadd.f32 %v327, %v427
    %v460 = vadd.f32 %v328, %v428
    %v461 = vadd.f32 %v329, %v429
    %v462 = vadd.f32 %v330, %v430
    %v463 = vadd.f32 %v331, %v431
    %v464 = vadd.f32 %v332, %v432
    %v465 = vadd.f32 %v333, %v433
    %v466 = vadd.f32 %v334, %v434
    %v467 = vadd.f32 %v335, %v435
    %v468 = vadd.f32 %v336, %v436
    %v469 = vadd.f32 %v337, %v437
    %v470 = vadd.f32 %v338, %v438
    %471 = vset.pattern.permute.xlu0 3
    %472 = vperm.xlu0 %471, %v89
    %v473 = vpop.permute.xlu0 %472
    %475 = vset.pattern.permute.xlu0 3
    %476 = vperm.xlu0 %475, %v90
    %v477 = vpop.permute.xlu0 %476
    %479 = vset.pattern.permute.xlu0 3
    %480 = vperm.xlu0 %479, %v91
    %v481 = vpop.permute.xlu0 %480
    %483 = vset.pattern.permute.xlu0 3
    %484 = vperm.xlu0 %483, %v92
    %v485 = vpop.permute.xlu0 %484
    %487 = vset.pattern.permute.xlu0 3
    %488 = vperm.xlu0 %487, %v93
    %v489 = vpop.permute.xlu0 %488
    %491 = vset.pattern.permute.xlu0 3
    %492 = vperm.xlu0 %491, %v94
    %v493 = vpop.permute.xlu0 %492
    %495 = vset.pattern.permute.xlu0 3
    %496 = vperm.xlu0 %495, %v95
    %v497 = vpop.permute.xlu0 %496
    %499 = vset.pattern.permute.xlu0 3
    %500 = vperm.xlu0 %499, %v96
    %v501 = vpop.permute.xlu0 %500
    %v503 = vlaneseq
    %v504 = vshrl.u32 %v503, 7
    %v505 = vsub.s32 3, %v504
    %v506 = vrot.slane %v87, %v505
    %v507 = vlaneseq
    %v508 = vshrl.u32 %v507, 7
    %v509 = vsub.s32 7, %v508
    %v510 = vrot.slane %v87, %v509
    %v511 = vlaneseq
    %v512 = vshrl.u32 %v511, 7
    %v513 = vsub.s32 3, %v512
    %v514 = vrot.slane %v88, %v513
    %v515 = vlaneseq
    %v516 = vshrl.u32 %v515, 7
    %v517 = vsub.s32 7, %v516
    %v518 = vrot.slane %v88, %v517
    %v523 = vlaneseq
    %v524 = vshrl.u32 %v523, 7
    %v525 = vsub.s32 3, %v524
    %v526 = vrot.slane %v506, %v525
    %v527 = vlaneseq
    %v528 = vshrl.u32 %v527, 7
    %v529 = vsub.s32 3, %v528
    %v530 = vrot.slane %v510, %v529
    %v531 = vlaneseq
    %v532 = vshrl.u32 %v531, 7
    %v533 = vsub.s32 3, %v532
    %v534 = vrot.slane %v514, %v533
    %v535 = vlaneseq
    %v536 = vshrl.u32 %v535, 7
    %v537 = vsub.s32 3, %v536
    %v538 = vrot.slane %v518, %v537
    %v539 = vmul.f32 %v473, %v526
    %v540 = vmul.f32 %v473, %v530
    %v541 = vmul.f32 %v473, %v534
    %v542 = vmul.f32 %v473, %v538
    %v543 = vmul.f32 %v477, %v526
    %v544 = vmul.f32 %v477, %v530
    %v545 = vmul.f32 %v477, %v534
    %v546 = vmul.f32 %v477, %v538
    %v547 = vmul.f32 %v481, %v526
    %v548 = vmul.f32 %v481, %v530
    %v549 = vmul.f32 %v481, %v534
    %v550 = vmul.f32 %v481, %v538
    %v551 = vmul.f32 %v485, %v526
    %v552 = vmul.f32 %v485, %v530
    %v553 = vmul.f32 %v485, %v534
    %v554 = vmul.f32 %v485, %v538
    %v555 = vmul.f32 %v489, %v526
    %v556 = vmul.f32 %v489, %v530
    %v557 = vmul.f32 %v489, %v534
    %v558 = vmul.f32 %v489, %v538
    %v559 = vmul.f32 %v493, %v526
    %v560 = vmul.f32 %v493, %v530
    %v561 = vmul.f32 %v493, %v534
    %v562 = vmul.f32 %v493, %v538
    %v563 = vmul.f32 %v497, %v526
    %v564 = vmul.f32 %v497, %v530
    %v565 = vmul.f32 %v497, %v534
    %v566 = vmul.f32 %v497, %v538
    %v567 = vmul.f32 %v501, %v526
    %v568 = vmul.f32 %v501, %v530
    %v569 = vmul.f32 %v501, %v534
    %v570 = vmul.f32 %v501, %v538
    %v571 = vadd.f32 %v439, %v539
    %v572 = vadd.f32 %v440, %v540
    %v573 = vadd.f32 %v441, %v541
    %v574 = vadd.f32 %v442, %v542
    %v575 = vadd.f32 %v443, %v543
    %v576 = vadd.f32 %v444, %v544
    %v577 = vadd.f32 %v445, %v545
    %v578 = vadd.f32 %v446, %v546
    %v579 = vadd.f32 %v447, %v547
    %v580 = vadd.f32 %v448, %v548
    %v581 = vadd.f32 %v449, %v549
    %v582 = vadd.f32 %v450, %v550
    %v583 = vadd.f32 %v451, %v551
    %v584 = vadd.f32 %v452, %v552
    %v585 = vadd.f32 %v453, %v553
    %v586 = vadd.f32 %v454, %v554
    %v587 = vadd.f32 %v455, %v555
    %v588 = vadd.f32 %v456, %v556
    %v589 = vadd.f32 %v457, %v557
    %v590 = vadd.f32 %v458, %v558
    %v591 = vadd.f32 %v459, %v559
    %v592 = vadd.f32 %v460, %v560
    %v593 = vadd.f32 %v461, %v561
    %v594 = vadd.f32 %v462, %v562
    %v595 = vadd.f32 %v463, %v563
    %v596 = vadd.f32 %v464, %v564
    %v597 = vadd.f32 %v465, %v565
    %v598 = vadd.f32 %v466, %v566
    %v599 = vadd.f32 %v467, %v567
    %v600 = vadd.f32 %v468, %v568
    %v601 = vadd.f32 %v469, %v569
    %v602 = vadd.f32 %v470, %v570
    %603 = vset.pattern.permute.xlu0 4
    %604 = vperm.xlu0 %603, %v89
    %v605 = vpop.permute.xlu0 %604
    %607 = vset.pattern.permute.xlu0 4
    %608 = vperm.xlu0 %607, %v90
    %v609 = vpop.permute.xlu0 %608
    %611 = vset.pattern.permute.xlu0 4
    %612 = vperm.xlu0 %611, %v91
    %v613 = vpop.permute.xlu0 %612
    %615 = vset.pattern.permute.xlu0 4
    %616 = vperm.xlu0 %615, %v92
    %v617 = vpop.permute.xlu0 %616
    %619 = vset.pattern.permute.xlu0 4
    %620 = vperm.xlu0 %619, %v93
    %v621 = vpop.permute.xlu0 %620
    %623 = vset.pattern.permute.xlu0 4
    %624 = vperm.xlu0 %623, %v94
    %v625 = vpop.permute.xlu0 %624
    %627 = vset.pattern.permute.xlu0 4
    %628 = vperm.xlu0 %627, %v95
    %v629 = vpop.permute.xlu0 %628
    %631 = vset.pattern.permute.xlu0 4
    %632 = vperm.xlu0 %631, %v96
    %v633 = vpop.permute.xlu0 %632
    %v635 = vadd.f32 %v571, %v605
    %v636 = vadd.f32 %v572, %v605
    %v637 = vadd.f32 %v573, %v605
    %v638 = vadd.f32 %v574, %v605
    %v639 = vadd.f32 %v575, %v609
    %v640 = vadd.f32 %v576, %v609
    %v641 = vadd.f32 %v577, %v609
    %v642 = vadd.f32 %v578, %v609
    %v643 = vadd.f32 %v579, %v613
    %v644 = vadd.f32 %v580, %v613
    %v645 = vadd.f32 %v581, %v613
    %v646 = vadd.f32 %v582, %v613
    %v647 = vadd.f32 %v583, %v617
    %v648 = vadd.f32 %v584, %v617
    %v649 = vadd.f32 %v585, %v617
    %v650 = vadd.f32 %v586, %v617
    %v651 = vadd.f32 %v587, %v621
    %v652 = vadd.f32 %v588, %v621
    %v653 = vadd.f32 %v589, %v621
    %v654 = vadd.f32 %v590, %v621
    %v655 = vadd.f32 %v591, %v625
    %v656 = vadd.f32 %v592, %v625
    %v657 = vadd.f32 %v593, %v625
    %v658 = vadd.f32 %v594, %v625
    %v659 = vadd.f32 %v595, %v629
    %v660 = vadd.f32 %v596, %v629
    %v661 = vadd.f32 %v597, %v629
    %v662 = vadd.f32 %v598, %v629
    %v663 = vadd.f32 %v599, %v633
    %v664 = vadd.f32 %v600, %v633
    %v665 = vadd.f32 %v601, %v633
    %v666 = vadd.f32 %v602, %v633
    %v667 = vmax.f32 %v635, 0.0
    %v668 = vmax.f32 %v636, 0.0
    %v669 = vmax.f32 %v637, 0.0
    %v670 = vmax.f32 %v638, 0.0
    %v671 = vmax.f32 %v639, 0.0
    %v672 = vmax.f32 %v640, 0.0
    %v673 = vmax.f32 %v641, 0.0
    %v674 = vmax.f32 %v642, 0.0
    %v675 = vmax.f32 %v643, 0.0
    %v676 = vmax.f32 %v644, 0.0
    %v677 = vmax.f32 %v645, 0.0
    %v678 = vmax.f32 %v646, 0.0
    %v679 = vmax.f32 %v647, 0.0
    %v680 = vmax.f32 %v648, 0.0
    %v681 = vmax.f32 %v649, 0.0
    %v682 = vmax.f32 %v650, 0.0
    %v683 = vmax.f32 %v651, 0.0
    %v684 = vmax.f32 %v652, 0.0
    %v685 = vmax.f32 %v653, 0.0
    %v686 = vmax.f32 %v654, 0.0
    %v687 = vmax.f32 %v655, 0.0
    %v688 = vmax.f32 %v656, 0.0
    %v689 = vmax.f32 %v657, 0.0
    %v690 = vmax.f32 %v658, 0.0
    %v691 = vmax.f32 %v659, 0.0
    %v692 = vmax.f32 %v660, 0.0
    %v693 = vmax.f32 %v661, 0.0
    %v694 = vmax.f32 %v662, 0.0
    %v695 = vmax.f32 %v663, 0.0
    %v696 = vmax.f32 %v664, 0.0
    %v697 = vmax.f32 %v665, 0.0
    %v698 = vmax.f32 %v666, 0.0
    %v699 = vadd.f32 %v667, %v668
    %700 = vadd.xlane.f32.xlu0 %v699
    %v701 = vpop.xlane.xlu0 %700
    %v702 = vadd.f32 %v671, %v672
    %703 = vadd.xlane.f32.xlu0 %v702
    %v704 = vpop.xlane.xlu0 %703
    %v705 = vadd.f32 %v675, %v676
    %706 = vadd.xlane.f32.xlu0 %v705
    %v707 = vpop.xlane.xlu0 %706
    %v708 = vadd.f32 %v679, %v680
    %709 = vadd.xlane.f32.xlu0 %v708
    %v710 = vpop.xlane.xlu0 %709
    %v711 = vadd.f32 %v683, %v684
    %712 = vadd.xlane.f32.xlu0 %v711
    %v713 = vpop.xlane.xlu0 %712
    %v714 = vadd.f32 %v687, %v688
    %715 = vadd.xlane.f32.xlu0 %v714
    %v716 = vpop.xlane.xlu0 %715
    %v717 = vadd.f32 %v691, %v692
    %718 = vadd.xlane.f32.xlu0 %v717
    %v719 = vpop.xlane.xlu0 %718
    %v720 = vadd.f32 %v695, %v696
    %721 = vadd.xlane.f32.xlu0 %v720
    %v722 = vpop.xlane.xlu0 %721
    %v723 = vadd.f32 %v669, %v670
    %724 = vadd.xlane.f32.xlu0 %v723
    %v725 = vpop.xlane.xlu0 %724
    %v726 = vadd.f32 %v673, %v674
    %727 = vadd.xlane.f32.xlu0 %v726
    %v728 = vpop.xlane.xlu0 %727
    %v729 = vadd.f32 %v677, %v678
    %730 = vadd.xlane.f32.xlu0 %v729
    %v731 = vpop.xlane.xlu0 %730
    %v732 = vadd.f32 %v681, %v682
    %733 = vadd.xlane.f32.xlu0 %v732
    %v734 = vpop.xlane.xlu0 %733
    %v735 = vadd.f32 %v685, %v686
    %736 = vadd.xlane.f32.xlu0 %v735
    %v737 = vpop.xlane.xlu0 %736
    %v738 = vadd.f32 %v689, %v690
    %739 = vadd.xlane.f32.xlu0 %v738
    %v740 = vpop.xlane.xlu0 %739
    %v741 = vadd.f32 %v693, %v694
    %742 = vadd.xlane.f32.xlu0 %v741
    %v743 = vpop.xlane.xlu0 %742
    %v744 = vadd.f32 %v697, %v698
    %745 = vadd.xlane.f32.xlu0 %v744
    %v746 = vpop.xlane.xlu0 %745
    %vm747 = vcmask 7168
    %v748 = vsel %vm747, %v701, %v725
    %v749 = vsel %vm747, %v704, %v728
    %v750 = vsel %vm747, %v707, %v731
    %v751 = vsel %vm747, %v710, %v734
    %v752 = vsel %vm747, %v713, %v737
    %v753 = vsel %vm747, %v716, %v740
    %v754 = vsel %vm747, %v719, %v743
    %v755 = vsel %vm747, %v722, %v746
    %v756 = vld [vmem:[%s2] sm:$0xff]
    %v757 = vld [vmem:[%s2 + $0x8] sm:$0xff]
    %v758 = vld [vmem:[%s2 + $0x10] sm:$0xff]
    %v759 = vld [vmem:[%s2 + $0x18] sm:$0xff]
    %v760 = vpack.c.bf16 %v749, %v748
    %v761 = vpack.c.bf16 %v751, %v750
    %v762 = vpack.c.bf16 %v753, %v752
    %v763 = vpack.c.bf16 %v755, %v754
    %s764 = smul.u32 4, 8
    %s765 = smul.u32 %s764, 4
    %s766 = sshll.u32 %s765, 4
    %767 = dma.done [#allocation4], %s766
    %v768 = vld [vmem:[#allocation2] sm:$0xff]
    %v769 = vld [vmem:[#allocation2 + $0x8] sm:$0xff]
    %v770 = vld [vmem:[#allocation2 + $0x10] sm:$0xff]
    %v771 = vld [vmem:[#allocation2 + $0x18] sm:$0xff]
    %v772 = vld [vmem:[#allocation2 + $0x20] sm:$0xff]
    %v773 = vld [vmem:[#allocation2 + $0x28] sm:$0xff]
    %v774 = vld [vmem:[#allocation2 + $0x30] sm:$0xff]
    %v775 = vld [vmem:[#allocation2 + $0x38] sm:$0xff]
    %v776 = vld [vmem:[#allocation2 + $0x40] sm:$0xff]
    %v777 = vld [vmem:[#allocation2 + $0x48] sm:$0xff]
    %v778 = vld [vmem:[#allocation2 + $0x50] sm:$0xff]
    %v779 = vld [vmem:[#allocation2 + $0x58] sm:$0xff]
    %v780 = vld [vmem:[#allocation2 + $0x60] sm:$0xff]
    %v781 = vld [vmem:[#allocation2 + $0x68] sm:$0xff]
    %v782 = vld [vmem:[#allocation2 + $0x70] sm:$0xff]
    %v783 = vld [vmem:[#allocation2 + $0x78] sm:$0xff]
    %v784 = vlaneseq
    %v785 = vshrl.u32 %v784, 7
    %v786 = vsub.s32 0, %v785
    %v787 = vrot.slane %v756, %v786
    %v788 = vlaneseq
    %v789 = vshrl.u32 %v788, 7
    %v790 = vsub.s32 0, %v789
    %v791 = vrot.slane %v757, %v790
    %v792 = vlaneseq
    %v793 = vshrl.u32 %v792, 7
    %v794 = vsub.s32 0, %v793
    %v795 = vrot.slane %v758, %v794
    %v796 = vlaneseq
    %v797 = vshrl.u32 %v796, 7
    %v798 = vsub.s32 0, %v797
    %v799 = vrot.slane %v759, %v798
    %800 = vxpose.xlu0.c.b16.start [1/8] %v760, 128
    %801 = vxpose.xlu0.c.b16.cont [2/8] %v761, 128
    %802 = vxpose.xlu0.c.b16.cont [3/8] %v762, 128
    %803 = vxpose.xlu0.c.b16.cont [4/8] %v763, 128
    %804 = vxpose.xlu0.c.b16.cont [5/8] 0, 128
    %805 = vxpose.xlu0.c.b16.cont [6/8] 0, 128
    %806 = vxpose.xlu0.c.b16.cont [7/8] 0, 128
    %807 = vxpose.xlu0.c.b16.end [8/8] 0, 128
    %v808 = vpop.trf.xlu0
    %v809 = vpop.trf.xlu0
    %v810 = vpop.trf.xlu0
    %v811 = vpop.trf.xlu0
    %v812 = vpop.trf.xlu0
    %v813 = vpop.trf.xlu0
    %v814 = vpop.trf.xlu0
    %v815 = vpop.trf.xlu0
    %vm816 = vcmask 523264
    %v818 = vsel %vm816, %v808, 0
    %820 = vmatprep.subr.bf16.mxu0 %v769
    %821 = vmatpush1.bf16.msra.mxu0 %v768
    %822 = vmatprep.subr.bf16.mxu0 %v773
    %823 = vmatpush1.bf16.msra.mxu0 %v772
    %824 = vmatprep.subr.bf16.mxu0 %v777
    %825 = vmatpush1.bf16.msra.mxu0 %v776
    %826 = vmatprep.subr.bf16.mxu0 %v781
    %827 = vmatpush1.bf16.msra.mxu0 %v780
    %828 = vmatprep.subr.bf16.mxu0 0
    %829 = vmatpush1.bf16.msra.mxu0 0
    %830 = vmatprep.subr.bf16.mxu0 0
    %831 = vmatpush1.bf16.msra.mxu0 0
    %832 = vmatprep.subr.bf16.mxu0 0
    %833 = vmatpush1.bf16.msra.mxu0 0
    %834 = vmatprep.subr.bf16.mxu0 0
    %835 = vmatpush1.bf16.msra.mxu0 0
    %836 = vmatprep.subr.bf16.mxu0 0
    %837 = vmatpush1.bf16.msra.mxu0 0
    %838 = vmatprep.subr.bf16.mxu0 0
    %839 = vmatpush1.bf16.msra.mxu0 0
    %840 = vmatprep.subr.bf16.mxu0 0
    %841 = vmatpush1.bf16.msra.mxu0 0
    %842 = vmatprep.subr.bf16.mxu0 0
    %843 = vmatpush1.bf16.msra.mxu0 0
    %844 = vmatprep.subr.bf16.mxu0 0
    %845 = vmatpush1.bf16.msra.mxu0 0
    %846 = vmatprep.subr.bf16.mxu0 0
    %847 = vmatpush1.bf16.msra.mxu0 0
    %848 = vmatprep.subr.bf16.mxu0 0
    %849 = vmatpush1.bf16.msra.mxu0 0
    %850 = vmatprep.subr.bf16.mxu0 0
    %851 = vmatpush1.bf16.msra.mxu0 0
    %852 = vmatprep.mubr.bf16.mxu0 0
    %853 = vmatmul.mubr.bf16.gmra.mrb[0].mxu0 %v818
    %v854 = vpop.f32.mrb[0].mxu0
    %v855 = vadd.f32 %v787, %v854
    %v856 = vpop.f32.mrb[0].mxu0
    %v857 = vadd.f32 %v791, %v856
    %v858 = vpop.f32.mrb[0].mxu0
    %v859 = vpop.f32.mrb[0].mxu0
    %860 = vdwg.mxu0
    %861 = vmatprep.subr.bf16.mxu0 %v771
    %862 = vmatpush1.bf16.msra.mxu0 %v770
    %863 = vmatprep.subr.bf16.mxu0 %v775
    %864 = vmatpush1.bf16.msra.mxu0 %v774
    %865 = vmatprep.subr.bf16.mxu0 %v779
    %866 = vmatpush1.bf16.msra.mxu0 %v778
    %867 = vmatprep.subr.bf16.mxu0 %v783
    %868 = vmatpush1.bf16.msra.mxu0 %v782
    %869 = vmatprep.subr.bf16.mxu0 0
    %870 = vmatpush1.bf16.msra.mxu0 0
    %871 = vmatprep.subr.bf16.mxu0 0
    %872 = vmatpush1.bf16.msra.mxu0 0
    %873 = vmatprep.subr.bf16.mxu0 0
    %874 = vmatpush1.bf16.msra.mxu0 0
    %875 = vmatprep.subr.bf16.mxu0 0
    %876 = vmatpush1.bf16.msra.mxu0 0
    %877 = vmatprep.subr.bf16.mxu0 0
    %878 = vmatpush1.bf16.msra.mxu0 0
    %879 = vmatprep.subr.bf16.mxu0 0
    %880 = vmatpush1.bf16.msra.mxu0 0
    %881 = vmatprep.subr.bf16.mxu0 0
    %882 = vmatpush1.bf16.msra.mxu0 0
    %883 = vmatprep.subr.bf16.mxu0 0
    %884 = vmatpush1.bf16.msra.mxu0 0
    %885 = vmatprep.subr.bf16.mxu0 0
    %886 = vmatpush1.bf16.msra.mxu0 0
    %887 = vmatprep.subr.bf16.mxu0 0
    %888 = vmatpush1.bf16.msra.mxu0 0
    %889 = vmatprep.subr.bf16.mxu0 0
    %890 = vmatpush1.bf16.msra.mxu0 0
    %891 = vmatprep.subr.bf16.mxu0 0
    %892 = vmatpush1.bf16.msra.mxu0 0
    %893 = vmatprep.mubr.bf16.mxu0 0
    %894 = vmatmul.mubr.bf16.gmra.mrb[0].mxu0 %v818
    %v895 = vpop.f32.mrb[0].mxu0
    %v896 = vadd.f32 %v795, %v895
    %v897 = vpop.f32.mrb[0].mxu0
    %v898 = vadd.f32 %v799, %v897
    %v899 = vpop.f32.mrb[0].mxu0
    %v900 = vpop.f32.mrb[0].mxu0
    %901 = vdwg.mxu0
    %v902 = vmax.f32 %v855, 0.0
    %v903 = vmax.f32 %v857, 0.0
    %v904 = vmax.f32 %v896, 0.0
    %v905 = vmax.f32 %v898, 0.0
    %s906 = smul.u32 4, 64
    %s907 = smul.u32 %s906, 2
    %s908 = sshll.u32 %s907, 4
    %909 = dma.done %s52, %s908
    %v910 = vpack.c.bf16 %v902, %v902
    %v911 = vpack.c.bf16 %v903, %v903
    %v912 = vpack.c.bf16 %v904, %v904
    %v913 = vpack.c.bf16 %v905, %v905
    %v914 = vld [vmem:[#allocation3] sm:$0xff]
    %v915 = vld [vmem:[#allocation3 + $0x8] sm:$0xff]
    %v916 = vld [vmem:[#allocation3 + $0x10] sm:$0xff]
    %v917 = vld [vmem:[#allocation3 + $0x18] sm:$0xff]
    %v918 = vld [vmem:[#allocation3 + $0x20] sm:$0xff]
    %v919 = vld [vmem:[#allocation3 + $0x28] sm:$0xff]
    %v920 = vld [vmem:[#allocation3 + $0x30] sm:$0xff]
    %v921 = vld [vmem:[#allocation3 + $0x38] sm:$0xff]
    %v922 = vld [vmem:[#allocation3 + $0x40] sm:$0xff]
    %v923 = vld [vmem:[#allocation3 + $0x48] sm:$0xff]
    %v924 = vld [vmem:[#allocation3 + $0x50] sm:$0xff]
    %v925 = vld [vmem:[#allocation3 + $0x58] sm:$0xff]
    %v926 = vld [vmem:[#allocation3 + $0x60] sm:$0xff]
    %v927 = vld [vmem:[#allocation3 + $0x68] sm:$0xff]
    %v928 = vld [vmem:[#allocation3 + $0x70] sm:$0xff]
    %v929 = vld [vmem:[#allocation3 + $0x78] sm:$0xff]
    %v930 = vld [vmem:[#allocation3 + $0x80] sm:$0xff]
    %v931 = vld [vmem:[#allocation3 + $0x88] sm:$0xff]
    %v932 = vld [vmem:[#allocation3 + $0x90] sm:$0xff]
    %v933 = vld [vmem:[#allocation3 + $0x98] sm:$0xff]
    %v934 = vld [vmem:[#allocation3 + $0xa0] sm:$0xff]
    %v935 = vld [vmem:[#allocation3 + $0xa8] sm:$0xff]
    %v936 = vld [vmem:[#allocation3 + $0xb0] sm:$0xff]
    %v937 = vld [vmem:[#allocation3 + $0xb8] sm:$0xff]
    %v938 = vld [vmem:[#allocation3 + $0xc0] sm:$0xff]
    %v939 = vld [vmem:[#allocation3 + $0xc8] sm:$0xff]
    %v940 = vld [vmem:[#allocation3 + $0xd0] sm:$0xff]
    %v941 = vld [vmem:[#allocation3 + $0xd8] sm:$0xff]
    %v942 = vld [vmem:[#allocation3 + $0xe0] sm:$0xff]
    %v943 = vld [vmem:[#allocation3 + $0xe8] sm:$0xff]
    %v944 = vld [vmem:[#allocation3 + $0xf0] sm:$0xff]
    %v945 = vld [vmem:[#allocation3 + $0xf8] sm:$0xff]
    %v946 = vld [vmem:[#allocation3 + $0x100] sm:$0xff]
    %v947 = vld [vmem:[#allocation3 + $0x108] sm:$0xff]
    %v948 = vld [vmem:[#allocation3 + $0x110] sm:$0xff]
    %v949 = vld [vmem:[#allocation3 + $0x118] sm:$0xff]
    %v950 = vld [vmem:[#allocation3 + $0x120] sm:$0xff]
    %v951 = vld [vmem:[#allocation3 + $0x128] sm:$0xff]
    %v952 = vld [vmem:[#allocation3 + $0x130] sm:$0xff]
    %v953 = vld [vmem:[#allocation3 + $0x138] sm:$0xff]
    %v954 = vld [vmem:[#allocation3 + $0x140] sm:$0xff]
    %v955 = vld [vmem:[#allocation3 + $0x148] sm:$0xff]
    %v956 = vld [vmem:[#allocation3 + $0x150] sm:$0xff]
    %v957 = vld [vmem:[#allocation3 + $0x158] sm:$0xff]
    %v958 = vld [vmem:[#allocation3 + $0x160] sm:$0xff]
    %v959 = vld [vmem:[#allocation3 + $0x168] sm:$0xff]
    %v960 = vld [vmem:[#allocation3 + $0x170] sm:$0xff]
    %v961 = vld [vmem:[#allocation3 + $0x178] sm:$0xff]
    %v962 = vld [vmem:[#allocation3 + $0x180] sm:$0xff]
    %v963 = vld [vmem:[#allocation3 + $0x188] sm:$0xff]
    %v964 = vld [vmem:[#allocation3 + $0x190] sm:$0xff]
    %v965 = vld [vmem:[#allocation3 + $0x198] sm:$0xff]
    %v966 = vld [vmem:[#allocation3 + $0x1a0] sm:$0xff]
    %v967 = vld [vmem:[#allocation3 + $0x1a8] sm:$0xff]
    %v968 = vld [vmem:[#allocation3 + $0x1b0] sm:$0xff]
    %v969 = vld [vmem:[#allocation3 + $0x1b8] sm:$0xff]
    %v970 = vld [vmem:[#allocation3 + $0x1c0] sm:$0xff]
    %v971 = vld [vmem:[#allocation3 + $0x1c8] sm:$0xff]
    %v972 = vld [vmem:[#allocation3 + $0x1d0] sm:$0xff]
    %v973 = vld [vmem:[#allocation3 + $0x1d8] sm:$0xff]
    %v974 = vld [vmem:[#allocation3 + $0x1e0] sm:$0xff]
    %v975 = vld [vmem:[#allocation3 + $0x1e8] sm:$0xff]
    %v976 = vld [vmem:[#allocation3 + $0x1f0] sm:$0xff]
    %v977 = vld [vmem:[#allocation3 + $0x1f8] sm:$0xff]
    %v978 = vlaneseq
    %v979 = vshrl.u32 %v978, 7
    %v980 = vsub.s32 1, %v979
    %v981 = vrot.slane %v756, %v980
    %v982 = vlaneseq
    %v983 = vshrl.u32 %v982, 7
    %v984 = vsub.s32 1, %v983
    %v985 = vrot.slane %v757, %v984
    %986 = vmatprep.subr.bf16.mxu0 %v915
    %987 = vmatpush1.bf16.msra.mxu0 %v914
    %988 = vmatprep.subr.bf16.mxu0 %v917
    %989 = vmatpush1.bf16.msra.mxu0 %v916
    %990 = vmatprep.subr.bf16.mxu0 %v919
    %991 = vmatpush1.bf16.msra.mxu0 %v918
    %992 = vmatprep.subr.bf16.mxu0 %v921
    %993 = vmatpush1.bf16.msra.mxu0 %v920
    %994 = vmatprep.subr.bf16.mxu0 %v923
    %995 = vmatpush1.bf16.msra.mxu0 %v922
    %996 = vmatprep.subr.bf16.mxu0 %v925
    %997 = vmatpush1.bf16.msra.mxu0 %v924
    %998 = vmatprep.subr.bf16.mxu0 %v927
    %999 = vmatpush1.bf16.msra.mxu0 %v926
    %1000 = vmatprep.subr.bf16.mxu0 %v929
    %1001 = vmatpush1.bf16.msra.mxu0 %v928
    %1002 = vmatprep.subr.bf16.mxu0 %v931
    %1003 = vmatpush1.bf16.msra.mxu0 %v930
    %1004 = vmatprep.subr.bf16.mxu0 %v933
    %1005 = vmatpush1.bf16.msra.mxu0 %v932
    %1006 = vmatprep.subr.bf16.mxu0 %v935
    %1007 = vmatpush1.bf16.msra.mxu0 %v934
    %1008 = vmatprep.subr.bf16.mxu0 %v937
    %1009 = vmatpush1.bf16.msra.mxu0 %v936
    %1010 = vmatprep.subr.bf16.mxu0 %v939
    %1011 = vmatpush1.bf16.msra.mxu0 %v938
    %1012 = vmatprep.subr.bf16.mxu0 %v941
    %1013 = vmatpush1.bf16.msra.mxu0 %v940
    %1014 = vmatprep.subr.bf16.mxu0 %v943
    %1015 = vmatpush1.bf16.msra.mxu0 %v942
    %1016 = vmatprep.subr.bf16.mxu0 %v945
    %1017 = vmatpush1.bf16.msra.mxu0 %v944
    %1018 = vmatprep.mubr.bf16.mxu0 %v911
    %1019 = vmatmul.mubr.bf16.gmra.mrb[0].mxu0 %v910
    %v1020 = vpop.f32.mrb[0].mxu0
    %v1021 = vadd.f32 %v981, %v1020
    %v1022 = vpop.f32.mrb[0].mxu0
    %v1023 = vadd.f32 %v985, %v1022
    %v1024 = vpop.f32.mrb[0].mxu0
    %v1025 = vpop.f32.mrb[0].mxu0
    %1026 = vdwg.mxu0
    %1027 = vmatprep.subr.bf16.mxu0 %v947
    %1028 = vmatpush1.bf16.msra.mxu0 %v946
    %1029 = vmatprep.subr.bf16.mxu0 %v949
    %1030 = vmatpush1.bf16.msra.mxu0 %v948
    %1031 = vmatprep.subr.bf16.mxu0 %v951
    %1032 = vmatpush1.bf16.msra.mxu0 %v950
    %1033 = vmatprep.subr.bf16.mxu0 %v953
    %1034 = vmatpush1.bf16.msra.mxu0 %v952
    %1035 = vmatprep.subr.bf16.mxu0 %v955
    %1036 = vmatpush1.bf16.msra.mxu0 %v954
    %1037 = vmatprep.subr.bf16.mxu0 %v957
    %1038 = vmatpush1.bf16.msra.mxu0 %v956
    %1039 = vmatprep.subr.bf16.mxu0 %v959
    %1040 = vmatpush1.bf16.msra.mxu0 %v958
    %1041 = vmatprep.subr.bf16.mxu0 %v961
    %1042 = vmatpush1.bf16.msra.mxu0 %v960
    %1043 = vmatprep.subr.bf16.mxu0 %v963
    %1044 = vmatpush1.bf16.msra.mxu0 %v962
    %1045 = vmatprep.subr.bf16.mxu0 %v965
    %1046 = vmatpush1.bf16.msra.mxu0 %v964
    %1047 = vmatprep.subr.bf16.mxu0 %v967
    %1048 = vmatpush1.bf16.msra.mxu0 %v966
    %1049 = vmatprep.subr.bf16.mxu0 %v969
    %1050 = vmatpush1.bf16.msra.mxu0 %v968
    %1051 = vmatprep.subr.bf16.mxu0 %v971
    %1052 = vmatpush1.bf16.msra.mxu0 %v970
    %1053 = vmatprep.subr.bf16.mxu0 %v973
    %1054 = vmatpush1.bf16.msra.mxu0 %v972
    %1055 = vmatprep.subr.bf16.mxu0 %v975
    %1056 = vmatpush1.bf16.msra.mxu0 %v974
    %1057 = vmatprep.subr.bf16.mxu0 %v977
    %1058 = vmatpush1.bf16.msra.mxu0 %v976
    %1059 = vmatprep.mubr.bf16.mxu0 %v913
    %1060 = vmatmul.mubr.bf16.gmra.mrb[0].mxu0 %v912
    %v1061 = vpop.f32.mrb[0].mxu0
    %v1062 = vadd.f32 %v1021, %v1061
    %v1063 = vpop.f32.mrb[0].mxu0
    %v1064 = vadd.f32 %v1023, %v1063
    %v1065 = vpop.f32.mrb[0].mxu0
    %v1066 = vpop.f32.mrb[0].mxu0
    %1067 = vdwg.mxu0
    %v1068 = vmax.f32 %v1062, 0.0
    %v1069 = vmax.f32 %v1064, 0.0
    %v1070 = vlaneseq
    %v1071 = vshrl.u32 %v1070, 7
    %v1072 = vsub.s32 1, %v1071
    %v1073 = vrot.slane %v758, %v1072
    %v1074 = vlaneseq
    %v1075 = vshrl.u32 %v1074, 7
    %v1076 = vsub.s32 1, %v1075
    %v1077 = vrot.slane %v759, %v1076
    %v1078 = vmul.f32 %v1068, %v1073
    %v1079 = vmul.f32 %v1069, %v1077
    %vm1080 = vcmask 1041408
    %v1081 = vsel %vm1080, %v1078, 0.0
    %v1082 = vsel %vm1080, %v1079, 0.0
    %v1083 = vadd.f32 %v1081, %v1082
    %1084 = vadd.xlane.f32.xlu0 %v1083
    %v1085 = vpop.xlane.xlu0 %1084
    %v1086 = vlaneseq
    %v1087 = vshrl.u32 %v1086, 7
    %v1088 = vsub.s32 2, %v1087
    %v1089 = vrot.slane %v756, %v1088
    %v1090 = vadd.f32 %v1085, %v1089
    %vm1091 = vcmask 1024
    %1092 = vst.msk [vmem:[%s5] sm:$0x3] %vm1091, %v1090
    // Predicated region
    $region14: #{tpu_custom_call.1} parent=1 // pred_check
      _
    $region15: #{tpu_custom_call.1} parent=1 // pred_check_branch
      %1094 = sbr.rel (0) target = $region17
    $region16: #{tpu_custom_call.1} parent=1 // pred_region
      _
    $region17: #{tpu_custom_call.1} parent=1 // pred_fallthru
      _
    // Predicated region
    $region18: #{tpu_custom_call.1} parent=1 // pred_check
      _
    $region19: #{tpu_custom_call.1} parent=1 // pred_check_branch
      %1096 = sbr.rel (0) target = $region21
    $region20: #{tpu_custom_call.1} parent=1 // pred_region
      _
    $region21: #{tpu_custom_call.1} parent=1 // pred_fallthru
      _
  %1097 = vsyncmov [#allocation4]
  %s1098 = vpop.sfrf %1097
  %p1099 = scmp.eq.s32.totalorder %s1098, 0
  %p1100 = pneg %p1099
  %1102 = shalt.err (%p1100)
  %s1103 = scalar_lea.sflag [#allocation4], 1
  %1104 = vsyncmov %s1103
  %s1105 = vpop.sfrf %1104
  %p1106 = scmp.eq.s32.totalorder %s1105, 0
  %p1107 = pneg %p1106
  %1109 = shalt.err (%p1107)

</llo_original>
